<compile_context>
chip_gen: v7x
topology: tpu7x:2x2x1
jax: 0.10.0
libtpu: 0.0.40
codegen_flags: <defaults>
</compile_context>

<pallas_src>
import functools

import jax
import jax.numpy as jnp
from jax.experimental import pallas as pl
from jax.experimental.pallas import tpu as pltpu

K = 3
STRIDE = 2
PADDING = 1


def _round_up(x, m):
    return ((x + m - 1) // m) * m


def _cdiv(a, b):
    return -(-a // b)


def convt_sigmoid_kernel(p_ref, w_ref, o_ref):
    # p_ref : (4*Cin, TS)     parity-im2col patches tile (spatial*batch on lanes)
    # w_ref : (4*Cout, 4*Cin) stacked per-parity weight matrices
    # o_ref : (4*Cout, TS)    lane-dense output tile (parity-blocked layout)
    acc = jnp.dot(w_ref[...], p_ref[...], preferred_element_type=jnp.float32)
    # sigmoid(x) = 0.5*tanh(x/2) + 0.5  (stable, EUP tanh, no divide)
    o_ref[...] = (0.5 * jnp.tanh(0.5 * acc) + 0.5).astype(o_ref.dtype)


@functools.partial(jax.jit, static_argnames=("tile_cols",))
def conv_transpose2d_sigmoid(x_nchw, w, *, tile_cols=4096):
    """x_nchw: (N, Cin, H, W) f32; w: (Cin, Cout, K, K) (PyTorch ConvTranspose2d layout)."""
    N, Cin, H, W = x_nchw.shape
    Cout = w.shape[1]
    Ho = (H - 1) * STRIDE - 2 * PADDING + K          # = 2H - 1
    Wo = (W - 1) * STRIDE - 2 * PADDING + K          # = 2W - 1
    CP = 4 * Cout                                    # parity-stacked output rows (128)
    CT = 4 * Cin                                     # parity-im2col rows / taps (12)
    L = N * H * W                                    # batch folded into the lane axis

    # ---- tile sizing (round L to 128 first, then split; keep >= 2 grid steps) ----
    L_pad = _round_up(L, 128)
    n_tiles = max(2, _cdiv(L_pad, tile_cols))
    TS = _round_up(_cdiv(L_pad, n_tiles), 128)
    n_tiles = _cdiv(L_pad, TS)
    L_final = n_tiles * TS

    # ---- parity im2col: 4 shifted copies of the raw input (12 rows, no zeros) ----
    x32 = x_nchw.astype(jnp.float32)
    xpad = jnp.pad(x32, ((0, 0), (0, 0), (0, 1), (0, 1)))        # +1 zero row/col halo
    taps = [xpad[:, :, dh:dh + H, dw:dw + W]                     # (N, Cin, H, W) each
            for dh in (0, 1) for dw in (0, 1)]                   # tap order (0,0),(0,1),(1,0),(1,1)
    patches = jnp.stack(taps, axis=0)                            # (4, N, Cin, H, W)
    patches = jnp.transpose(patches, (0, 2, 1, 3, 4))            # (4, Cin, N, H, W)
    patches = patches.reshape(CT, L)
    patches = jnp.pad(patches, ((0, 0), (0, L_final - L)))       # lane-pad (sigmoid(0) tail, sliced)

    # ---- per-parity weight matrices stacked into one (4*Cout, 4*Cin) ----
    wt = jnp.transpose(w.astype(jnp.float32), (1, 0, 2, 3))      # (Cout, Cin, kh, kw)
    z = jnp.zeros((Cout, Cin), jnp.float32)
    # out[co, 2a,   2b  ] = w[ci,co,1,1]*x[a,b]
    w_ee = jnp.stack([wt[:, :, 1, 1], z, z, z], axis=1)
    # out[co, 2a,   2b+1] = w[ci,co,1,2]*x[a,b] + w[ci,co,1,0]*x[a,b+1]
    w_eo = jnp.stack([wt[:, :, 1, 2], wt[:, :, 1, 0], z, z], axis=1)
    # out[co, 2a+1, 2b  ] = w[ci,co,2,1]*x[a,b] + w[ci,co,0,1]*x[a+1,b]
    w_oe = jnp.stack([wt[:, :, 2, 1], z, wt[:, :, 0, 1], z], axis=1)
    # out[co, 2a+1, 2b+1] = w[2,2]*x[a,b] + w[2,0]*x[a,b+1] + w[0,2]*x[a+1,b] + w[0,0]*x[a+1,b+1]
    w_oo = jnp.stack([wt[:, :, 2, 2], wt[:, :, 2, 0],
                      wt[:, :, 0, 2], wt[:, :, 0, 0]], axis=1)
    w_all = jnp.stack([w_ee, w_eo, w_oe, w_oo], axis=0)          # (4, Cout, 4, Cin)
    w_all = w_all.reshape(CP, CT)

    out_flat = pl.pallas_call(
        convt_sigmoid_kernel,
        out_shape=jax.ShapeDtypeStruct((CP, L_final), jnp.float32),
        grid=(n_tiles,),
        in_specs=[
            pl.BlockSpec((CT, TS), lambda t: (0, t)),
            pl.BlockSpec((CP, CT), lambda t: (0, 0)),            # revisited: fetched once
        ],
        out_specs=pl.BlockSpec((CP, TS), lambda t: (0, t)),
        compiler_params=pltpu.CompilerParams(
            dimension_semantics=("parallel",)),
        cost_estimate=pl.CostEstimate(
            flops=2 * CP * CT * L_final,
            transcendentals=CP * L_final,
            bytes_accessed=4 * (CT * L_final + CP * CT + CP * L_final)),
    )(patches, w_all)

    # ---- depth-to-space: parity-blocked (4*Cout, N*H*W) -> NCHW (N, Cout, Ho, Wo) ----
    out = out_flat[:, :L].reshape(2, 2, Cout, N, H, W)           # (rh, rw, co, n, a, b)
    out = jnp.transpose(out, (3, 2, 4, 0, 5, 1))                 # (n, co, a, rh, b, rw)
    out = out.reshape(N, Cout, 2 * H, 2 * W)
    return out[:, :, :Ho, :Wo]


if __name__ == "__main__":
    key = jax.random.PRNGKey(0)
    kx, kw = jax.random.split(key)

    # small shapes consistent with the module: in_channels fixed to 3 by __init__
    N, Cin, H, W, Cout = 2, 3, 16, 16, 32
    x = jax.random.normal(kx, (N, Cin, H, W), dtype=jnp.float32)
    # PyTorch ConvTranspose2d weight layout: (Cin, Cout, K, K)
    w = jax.random.normal(kw, (Cin, Cout, K, K), dtype=jnp.float32) * 0.1

    out = conv_transpose2d_sigmoid(x, w)
    out = jax.block_until_ready(out)

    # independent XLA reference: transposed conv == lhs-dilated regular conv (flipped kernel)
    w_conv = jnp.transpose(w[:, :, ::-1, ::-1], (1, 0, 2, 3))    # OIHW
    ref = jax.lax.conv_general_dilated(
        x, w_conv,
        window_strides=(1, 1),
        padding=[(K - 1 - PADDING, K - 1 - PADDING)] * 2,
        lhs_dilation=(STRIDE, STRIDE),
        dimension_numbers=("NCHW", "OIHW", "NCHW"),
        precision=jax.lax.Precision.HIGHEST)
    ref = jax.nn.sigmoid(ref)

    Ho = (H - 1) * STRIDE - 2 * PADDING + K
    Wo = (W - 1) * STRIDE - 2 * PADDING + K
    assert out.shape == (N, Cout, Ho, Wo), out.shape
    assert out.dtype == jnp.float32
    err = float(jnp.max(jnp.abs(out - ref)))
    assert err < 1e-4, err
    print("KERNEL_OK")
</pallas_src>

<mosaic_0001>
module attributes {stable_mosaic.version = 11 : i64} {
  func.func @convt_sigmoid_kernel(%arg0: i32, %arg1: memref<12x256xf32, #tpu.memory_space<vmem>>, %arg2: memref<128x12xf32, #tpu.memory_space<vmem>>, %arg3: memref<128x256xf32, #tpu.memory_space<vmem>>) attributes {dimension_semantics = [#tpu.dimension_semantics<parallel>], iteration_bounds = array<i64: 2>, scalar_prefetch = 0 : i64, scratch_operands = 0 : i64, tpu.core_type = #tpu.core_type<tc>, window_params = [{transform_indices = @transform_0, window_bounds = array<i64: 12, 256>}, {pipeline_mode = #tpu.pipeline_mode<synchronous>, transform_indices = @transform_1, window_bounds = array<i64: 128, 12>}, {transform_indices = @transform_2, window_bounds = array<i64: 128, 256>}]} {
    %c0 = arith.constant 0 : index
    %c0_0 = arith.constant 0 : index
    %0 = vector.load %arg2[%c0, %c0_0] : memref<128x12xf32, #tpu.memory_space<vmem>>, vector<128x12xf32>
    %c0_1 = arith.constant 0 : index
    %c0_2 = arith.constant 0 : index
    %1 = vector.load %arg1[%c0_1, %c0_2] : memref<12x256xf32, #tpu.memory_space<vmem>>, vector<12x256xf32>
    %cst = arith.constant dense<0.000000e+00> : vector<128x256xf32>
    %2 = tpu.matmul %0, %1, %cst {dimension_numbers = #tpu.dot_dimension_numbers<[1], [0], [0], [1], [0, 0, 1, 1], [], []>} : vector<128x12xf32>, vector<12x256xf32>, vector<128x256xf32> -> vector<128x256xf32>
    %cst_3 = arith.constant 5.000000e-01 : f32
    %3 = vector.broadcast %cst_3 : f32 to vector<128x256xf32>
    %4 = arith.mulf %3, %2 : vector<128x256xf32>
    %5 = math.tanh %4 : vector<128x256xf32>
    %cst_4 = arith.constant 5.000000e-01 : f32
    %6 = vector.broadcast %cst_4 : f32 to vector<128x256xf32>
    %7 = arith.mulf %6, %5 : vector<128x256xf32>
    %cst_5 = arith.constant 5.000000e-01 : f32
    %8 = vector.broadcast %cst_5 : f32 to vector<128x256xf32>
    %9 = arith.addf %7, %8 : vector<128x256xf32>
    %c0_6 = arith.constant 0 : index
    %c0_7 = arith.constant 0 : index
    %10 = vector.load %arg3[%c0_6, %c0_7] : memref<128x256xf32, #tpu.memory_space<vmem>>, vector<128x256xf32>
    tpu.vector_store %arg3[%c0_6, %c0_7], %9 {strides = array<i32>} : memref<128x256xf32, #tpu.memory_space<vmem>>, vector<128x256xf32>,
    return
  }
  func.func @transform_0(%arg0: i32) -> (i32, i32) {
    %c0_i32 = arith.constant 0 : i32
    %c0_i32_0 = arith.constant 0 : i32
    return %c0_i32, %arg0 : i32, i32
  }
  func.func @transform_1(%arg0: i32) -> (i32, i32) {
    %c0_i32 = arith.constant 0 : i32
    %c0_i32_0 = arith.constant 0 : i32
    %c0_i32_1 = arith.constant 0 : i32
    return %c0_i32, %c0_i32_0 : i32, i32
  }
  func.func @transform_2(%arg0: i32) -> (i32, i32) {
    %c0_i32 = arith.constant 0 : i32
    %c0_i32_0 = arith.constant 0 : i32
    return %c0_i32, %arg0 : i32, i32
  }
}

</mosaic_0001>

<llo_original>
// kernel: conv_transpose2d_sigmoid.1
$region0: #{conv_transpose2d_sigmoid.1}
  #allocation0 [shape = 'u32[]', space=smem, size = 0x4, offset = 0x4, fixed_abs, tag = 'smem constant byte address 0x4 - core index']
  #allocation1 [shape = 'u32[144,128]{1,0:T(1,128)}', space=vmem, size = 0x12000, scoped, tag = 'internal scratch']
  %s0 = inlined_call_operand.vmem [shape: f32[12,512], index: 0, kind: input, shape index: {}]
  %s1 = inlined_call_operand.vmem [shape: f32[128,12], index: 1, kind: input, shape index: {}]
  %s2 = inlined_call_operand.vmem [shape: f32[128,512], index: 2, kind: output, shape index: {}]
  %s3 = sld [smem:[#allocation0]]
  $region83: #{conv_transpose2d_sigmoid.1} parent=0
    _
  %s5 = ssub.s32 1, %s3
  %s6 = scalar_select 0, %s5, %s3
  $region1: #{conv_transpose2d_sigmoid.1} parent=0
    #allocation2 [shape = 'u8[32768]{0}', space=vmem, size = 0x8000, scoped, tag = 'input window, operand 0']
    #allocation3 [shape = 'u8[262144]{0}', space=vmem, size = 0x40000, scoped, tag = 'output window, operand 0']
    loop: start=0, step=1, limit=4
    $region2: #{conv_transpose2d_sigmoid.1} parent=1 // loop_pre_header
      _
    $region3: #{conv_transpose2d_sigmoid.1} parent=1 // loop_header
      %s8 = sphi 0, %s12
      %p9 = scmp.ge.s32.totalorder %s8, 4
      %s18 = sphi 0, %s20
      %s21 = sphi 0, %s18
      %s22 = sphi 0, %s21
      %s38 = sphi 0, %s22
      %s42 = sphi 0, %s42
      %s44 = sphi 0, %s42
      %s45 = sphi 0, %s44
      %s59 = sphi 0, %s45
      %s65 = sphi 0, %s67
      %s68 = sphi 0, %s65
      %s69 = sphi 0, %s68
      %s85 = sphi 0, %s69
    $region4: #{conv_transpose2d_sigmoid.1} parent=1 // loop_header_branch
      %11 = sbr.rel (%p9) target = $region8
    $region5: #{conv_transpose2d_sigmoid.1} parent=1 // loop_body
      %s13 = ssub.s32 %s8, 1
      %s14 = ssub.s32 %s8, 2
      %s15 = sadd.s32 %s8, 1
      %s16 = ssub.s32 %s8, %s15
      %p17 = scmp.eq.s32.totalorder %s16, 0
      %s19 = sadd.s32 %s18, 1
      %s20 = scalar_select %p17, %s18, %s19
      %p23 = pneg %p17
      %p24 = scmp.eq.s32.totalorder %s8, 1
      %p25 = por %p23, %p24
      %p26 = scmp.ne.s32.totalorder %s18, %s21
      %p27 = scmp.eq.s32.totalorder %s8, 0
      %p28 = por %p26, %p27
      %p29 = scmp.ne.s32.totalorder %s18, %s21
      %p30 = scmp.eq.s32.totalorder %s13, 1
      %p31 = por %p29, %p30
      %p32 = scmp.ne.s32.totalorder %s21, %s22
      %p33 = scmp.eq.s32.totalorder %s13, 0
      %p34 = por %p32, %p33
      %p35 = scmp.ne.s32.totalorder %s21, %s22
      %p36 = scmp.eq.s32.totalorder %s14, 1
      %p37 = por %p35, %p36
      %p39 = scmp.ne.s32.totalorder %s22, %s38
      %p40 = scmp.eq.s32.totalorder %s14, 0
      %p41 = por %p39, %p40
      %s43 = sadd.s32 %s42, 1
      %p46 = scmp.eq.s32.totalorder %s8, 1
      %p47 = scmp.ne.s32.totalorder %s42, %s44
      %p48 = scmp.eq.s32.totalorder %s8, 0
      %p49 = por %p47, %p48
      %p50 = scmp.ne.s32.totalorder %s42, %s44
      %p51 = scmp.eq.s32.totalorder %s13, 1
      %p52 = por %p50, %p51
      %p53 = scmp.ne.s32.totalorder %s44, %s45
      %p54 = scmp.eq.s32.totalorder %s13, 0
      %p55 = por %p53, %p54
      %p56 = scmp.ne.s32.totalorder %s44, %s45
      %p57 = scmp.eq.s32.totalorder %s14, 1
      %p58 = por %p56, %p57
      %p60 = scmp.ne.s32.totalorder %s45, %s59
      %p61 = scmp.eq.s32.totalorder %s14, 0
      %p62 = por %p60, %p61
      %s63 = ssub.s32 %s8, %s15
      %p64 = scmp.eq.s32.totalorder %s63, 0
      %s66 = sadd.s32 %s65, 1
      %s67 = scalar_select %p64, %s65, %s66
      %p70 = pneg %p64
      %p71 = scmp.eq.s32.totalorder %s8, 1
      %p72 = por %p70, %p71
      %p73 = scmp.ne.s32.totalorder %s65, %s68
      %p74 = scmp.eq.s32.totalorder %s8, 0
      %p75 = por %p73, %p74
      %p76 = scmp.ne.s32.totalorder %s65, %s68
      %p77 = scmp.eq.s32.totalorder %s13, 1
      %p78 = por %p76, %p77
      %p79 = scmp.ne.s32.totalorder %s68, %s69
      %p80 = scmp.eq.s32.totalorder %s13, 0
      %p81 = por %p79, %p80
      %p82 = scmp.ne.s32.totalorder %s68, %s69
      %p83 = scmp.eq.s32.totalorder %s14, 1
      %p84 = por %p82, %p83
      %p86 = scmp.ne.s32.totalorder %s69, %s85
      %p87 = scmp.eq.s32.totalorder %s14, 0
      %p88 = por %p86, %p87
      %p89 = scmp.le.s32.totalorder 1, %s8
      %p90 = scmp.lt.s32.totalorder %s8, 3
      %p91 = pnand %p89, %p90
      %p92 = pneg %p91
      // Predicated region
      $region9: #{conv_transpose2d_sigmoid.1} parent=5 // pred_check
        _
      $region10: #{conv_transpose2d_sigmoid.1} parent=5 // pred_check_branch
        %94 = sbr.rel (%p91) target = $region12
      $region11: #{conv_transpose2d_sigmoid.1} parent=5 // pred_region
        %s95 = ssub.s32 %s8, 1
        // Predicated region
        $region13: #{conv_transpose2d_sigmoid.1} parent=11 // pred_check
          %p96 = pneg %p55
        $region14: #{conv_transpose2d_sigmoid.1} parent=11 // pred_check_branch
          %98 = sbr.rel (%p96) target = $region16
        $region15: #{conv_transpose2d_sigmoid.1} parent=11 // pred_region
          _
        $region16: #{conv_transpose2d_sigmoid.1} parent=11 // pred_fallthru
          _
      $region12: #{conv_transpose2d_sigmoid.1} parent=5 // pred_fallthru
        _
      %p99 = scmp.lt.s32.totalorder %s8, 2
      // Predicated region
      $region17: #{conv_transpose2d_sigmoid.1} parent=5 // pred_check
        %p100 = pneg %p99
      $region18: #{conv_transpose2d_sigmoid.1} parent=5 // pred_check_branch
        %102 = sbr.rel (%p100) target = $region20
      $region19: #{conv_transpose2d_sigmoid.1} parent=5 // pred_region
        // Predicated region
        $region21: #{conv_transpose2d_sigmoid.1} parent=19 // pred_check
          %p103 = pneg %p28
        $region22: #{conv_transpose2d_sigmoid.1} parent=19 // pred_check_branch
          %105 = sbr.rel (%p103) target = $region24
        $region23: #{conv_transpose2d_sigmoid.1} parent=19 // pred_region
          %s106 = sand.u32 %s18, 1
          %s107 = sand.u32 %s18, 1
          %s108 = smul.addr %s107, 32
          %s109 = scalar_lea.vmem [#allocation2], %s108
          %s110 = smul.u32 2, %s8
          %s111 = smul.addr %s110, 8
          %s112 = scalar_lea.vmem %s0, %s111
          // Predicated region
          $region25: #{conv_transpose2d_sigmoid.1} parent=23 // pred_check
            _
          $region26: #{conv_transpose2d_sigmoid.1} parent=23 // pred_check_branch
            %114 = sbr.rel (0) target = $region28
          $region27: #{conv_transpose2d_sigmoid.1} parent=23 // pred_region
            // Predicated region
            $region29: #{conv_transpose2d_sigmoid.1} parent=27 // pred_check
              _
            $region30: #{conv_transpose2d_sigmoid.1} parent=27 // pred_check_branch
              %116 = sbr.rel (0) target = $region32
            $region31: #{conv_transpose2d_sigmoid.1} parent=27 // pred_region
              loop: start=0, step=1, limit=1
              $region33: #{conv_transpose2d_sigmoid.1} parent=31 // loop_pre_header
                _
              $region34: #{conv_transpose2d_sigmoid.1} parent=31 // loop_header
                %s118 = sphi 0, %s122
                %p119 = scmp.ge.s32.totalorder %s118, 1
                %s123 = sphi %s112, %s112
                %s124 = sphi %s109, %s109
              $region35: #{conv_transpose2d_sigmoid.1} parent=31 // loop_header_branch
                %121 = sbr.rel (%p119) target = $region39
              $region36: #{conv_transpose2d_sigmoid.1} parent=31 // loop_body
                %v125 = vld [vmem:[%s123] sm:$0xff]
                %126 = vst [vmem:[%s124] sm:$0xff] %v125
                %v127 = vld [vmem:[%s123 + $0x8] sm:$0xff]
                %128 = vst [vmem:[%s124 + $0x8] sm:$0xff] %v127
                %v129 = vld [vmem:[%s123 + $0x20] sm:$0xff]
                %130 = vst [vmem:[%s124 + $0x10] sm:$0xff] %v129
                %v131 = vld [vmem:[%s123 + $0x28] sm:$0xff]
                %132 = vst [vmem:[%s124 + $0x18] sm:$0xff] %v131
              $region37: #{conv_transpose2d_sigmoid.1} parent=31 // loop_footer
                %s122 = sadd.s32 1, %s118
              $region38: #{conv_transpose2d_sigmoid.1} parent=31 // loop_footer_branch
                %117 = sbr.rel target = $region34
              $region39: #{conv_transpose2d_sigmoid.1} parent=31 // loop_exit
                _
            $region32: #{conv_transpose2d_sigmoid.1} parent=27 // pred_fallthru
              _
            // Predicated region
            $region40: #{conv_transpose2d_sigmoid.1} parent=27 // pred_check
              _
            $region41: #{conv_transpose2d_sigmoid.1} parent=27 // pred_check_branch
              %134 = sbr.rel target = $region43
            $region42: #{conv_transpose2d_sigmoid.1} parent=27 // pred_region
              _
            $region43: #{conv_transpose2d_sigmoid.1} parent=27 // pred_fallthru
              _
          $region28: #{conv_transpose2d_sigmoid.1} parent=23 // pred_fallthru
            _
          %135 = vnop
        $region24: #{conv_transpose2d_sigmoid.1} parent=19 // pred_fallthru
          _
      $region20: #{conv_transpose2d_sigmoid.1} parent=5 // pred_fallthru
        _
      %p136 = scmp.le.s32.totalorder 1, %s8
      %p137 = scmp.lt.s32.totalorder %s8, 3
      %p138 = pnand %p136, %p137
      %p139 = pneg %p138
      // Predicated region
      $region44: #{conv_transpose2d_sigmoid.1} parent=5 // pred_check
        _
      $region45: #{conv_transpose2d_sigmoid.1} parent=5 // pred_check_branch
        %141 = sbr.rel (%p138) target = $region47
      $region46: #{conv_transpose2d_sigmoid.1} parent=5 // pred_region
        %s142 = ssub.s32 %s8, 1
        %s143 = sand.u32 %s21, 1
        %s144 = sand.u32 %s21, 1
        %s145 = smul.addr %s144, 32
        %s146 = scalar_lea.vmem [#allocation2], %s145
        // Predicated region
        $region48: #{conv_transpose2d_sigmoid.1} parent=46 // pred_check
          %p147 = pneg %p34
        $region49: #{conv_transpose2d_sigmoid.1} parent=46 // pred_check_branch
          %149 = sbr.rel (%p147) target = $region51
        $region50: #{conv_transpose2d_sigmoid.1} parent=46 // pred_region
          _
        $region51: #{conv_transpose2d_sigmoid.1} parent=46 // pred_fallthru
          _
        %s150 = sand.u32 %s21, 1
        %s151 = sand.u32 %s21, 1
        %s152 = smul.addr %s151, 32
        %s153 = scalar_lea.vmem [#allocation2], %s152
        %p154 = pneg %p34
        %p155 = pneg %p31
        %p156 = pneg %p55
        %p157 = pneg %p52
        %p158 = pneg %p81
        %p159 = pneg %p78
        %s160 = sand.u32 %s68, 1
        %s161 = sand.u32 %s68, 1
        %s162 = smul.addr %s161, 256
        %s163 = scalar_lea.vmem [#allocation3], %s162
        %s164 = smul.u32 2, %s13
        %s165 = smul.u32 2, %s13
        %v166 = vld [vmem:[%s1] sm:$0xff]
        %v167 = vld [vmem:[%s1 + $0x8] sm:$0xff]
        %v168 = vld [vmem:[%s1 + $0x10] sm:$0xff]
        %v169 = vld [vmem:[%s1 + $0x18] sm:$0xff]
        %v170 = vld [vmem:[%s1 + $0x20] sm:$0xff]
        %v171 = vld [vmem:[%s1 + $0x28] sm:$0xff]
        %v172 = vld [vmem:[%s1 + $0x30] sm:$0xff]
        %v173 = vld [vmem:[%s1 + $0x38] sm:$0xff]
        %v174 = vld [vmem:[%s1 + $0x40] sm:$0xff]
        %v175 = vld [vmem:[%s1 + $0x48] sm:$0xff]
        %v176 = vld [vmem:[%s1 + $0x50] sm:$0xff]
        %v177 = vld [vmem:[%s1 + $0x58] sm:$0xff]
        %v178 = vld [vmem:[%s1 + $0x60] sm:$0xff]
        %v179 = vld [vmem:[%s1 + $0x68] sm:$0xff]
        %v180 = vld [vmem:[%s1 + $0x70] sm:$0xff]
        %v181 = vld [vmem:[%s1 + $0x78] sm:$0xff]
        %v182 = vld [vmem:[%s146] sm:$0xff]
        %v183 = vld [vmem:[%s146 + $0x8] sm:$0xff]
        %v184 = vld [vmem:[%s146 + $0x10] sm:$0xf]
        %v185 = vld [vmem:[%s146 + $0x18] sm:$0xf]
        %vm186 = vcmask 97280
        %v188 = vsel %vm186, %v166, 0
        %v191 = vsel %vm186, %v167, 0
        %v194 = vsel %vm186, %v168, 0
        %v197 = vsel %vm186, %v169, 0
        %v200 = vsel %vm186, %v170, 0
        %v203 = vsel %vm186, %v171, 0
        %v206 = vsel %vm186, %v172, 0
        %v209 = vsel %vm186, %v173, 0
        %v212 = vsel %vm186, %v174, 0
        %v215 = vsel %vm186, %v175, 0
        %v218 = vsel %vm186, %v176, 0
        %v221 = vsel %vm186, %v177, 0
        %v224 = vsel %vm186, %v178, 0
        %v227 = vsel %vm186, %v179, 0
        %v230 = vsel %vm186, %v180, 0
        %v233 = vsel %vm186, %v181, 0
        %vm235 = vcmask 1043456
        %v237 = vsel %vm235, %v184, 0
        %v240 = vsel %vm235, %v185, 0
        %242 = vmatprep.subr.mxu0 %v183
        %243 = vmatpush1.msra.mxu0 %v182
        %244 = vmatprep.subr.mxu0 %v240
        %245 = vmatpush1.msra.mxu0 %v237
        %246 = vmatprep.subr.mxu0 0.0
        %247 = vmatpush1.msra.mxu0 0.0
        %248 = vmatprep.subr.mxu0 0.0
        %249 = vmatpush1.msra.mxu0 0.0
        %250 = vmatprep.subr.mxu0 0.0
        %251 = vmatpush1.msra.mxu0 0.0
        %252 = vmatprep.subr.mxu0 0.0
        %253 = vmatpush1.msra.mxu0 0.0
        %254 = vmatprep.subr.mxu0 0.0
        %255 = vmatpush1.msra.mxu0 0.0
        %256 = vmatprep.subr.mxu0 0.0
        %257 = vmatpush1.msra.mxu0 0.0
        %258 = vmatprep.subr.mxu0 0.0
        %259 = vmatpush1.msra.mxu0 0.0
        %260 = vmatprep.subr.mxu0 0.0
        %261 = vmatpush1.msra.mxu0 0.0
        %262 = vmatprep.subr.mxu0 0.0
        %263 = vmatpush1.msra.mxu0 0.0
        %264 = vmatprep.subr.mxu0 0.0
        %265 = vmatpush1.msra.mxu0 0.0
        %266 = vmatprep.subr.mxu0 0.0
        %267 = vmatpush1.msra.mxu0 0.0
        %268 = vmatprep.subr.mxu0 0.0
        %269 = vmatpush1.msra.mxu0 0.0
        %270 = vmatprep.subr.mxu0 0.0
        %271 = vmatpush1.msra.mxu0 0.0
        %272 = vmatprep.subr.mxu0 0.0
        %273 = vmatpush1.msra.mxu0 0.0
        %274 = vmatprep.subr.mxu0 0.0
        %275 = vmatpush1.msra.mxu0 0.0
        %276 = vmatprep.subr.mxu0 0.0
        %277 = vmatpush1.msra.mxu0 0.0
        %278 = vmatprep.subr.mxu0 0.0
        %279 = vmatpush1.msra.mxu0 0.0
        %280 = vmatprep.subr.mxu0 0.0
        %281 = vmatpush1.msra.mxu0 0.0
        %282 = vmatprep.subr.mxu0 0.0
        %283 = vmatpush1.msra.mxu0 0.0
        %284 = vmatprep.subr.mxu0 0.0
        %285 = vmatpush1.msra.mxu0 0.0
        %286 = vmatprep.subr.mxu0 0.0
        %287 = vmatpush1.msra.mxu0 0.0
        %288 = vmatprep.subr.mxu0 0.0
        %289 = vmatpush1.msra.mxu0 0.0
        %290 = vmatprep.subr.mxu0 0.0
        %291 = vmatpush1.msra.mxu0 0.0
        %292 = vmatprep.subr.mxu0 0.0
        %293 = vmatpush1.msra.mxu0 0.0
        %294 = vmatprep.subr.mxu0 0.0
        %295 = vmatpush1.msra.mxu0 0.0
        %296 = vmatprep.subr.mxu0 0.0
        %297 = vmatpush1.msra.mxu0 0.0
        %298 = vmatprep.subr.mxu0 0.0
        %299 = vmatpush1.msra.mxu0 0.0
        %300 = vmatprep.subr.mxu0 0.0
        %301 = vmatpush1.msra.mxu0 0.0
        %302 = vmatprep.subr.mxu0 0.0
        %303 = vmatpush1.msra.mxu0 0.0
        %304 = vmatprep.subr.mxu0 0.0
        %305 = vmatpush1.msra.mxu0 0.0
        %306 = vmatprep.mubr.f32.mxu0 0.0
        %307 = vmatmul.mubr.f32.gmra.mrb[0].mxu0 %v188
        %v308 = vpop.f32.mrb[0].mxu0
        %v309 = vadd.f32 0.0, %v308
        %v310 = vpop.f32.mrb[0].mxu0
        %v311 = vadd.f32 0.0, %v310
        %312 = vmatprep.mubr.f32.mxu0 0.0
        %313 = vmatmul.mubr.f32.gmra.mrb[0].mxu0 %v191
        %v314 = vpop.f32.mrb[0].mxu0
        %v315 = vadd.f32 0.0, %v314
        %v316 = vpop.f32.mrb[0].mxu0
        %v317 = vadd.f32 0.0, %v316
        %318 = vmatprep.mubr.f32.mxu0 0.0
        %319 = vmatmul.mubr.f32.gmra.mrb[0].mxu0 %v194
        %v320 = vpop.f32.mrb[0].mxu0
        %v321 = vadd.f32 0.0, %v320
        %v322 = vpop.f32.mrb[0].mxu0
        %v323 = vadd.f32 0.0, %v322
        %324 = vmatprep.mubr.f32.mxu0 0.0
        %325 = vmatmul.mubr.f32.gmra.mrb[0].mxu0 %v197
        %v326 = vpop.f32.mrb[0].mxu0
        %v327 = vadd.f32 0.0, %v326
        %v328 = vpop.f32.mrb[0].mxu0
        %v329 = vadd.f32 0.0, %v328
        %330 = vmatprep.mubr.f32.mxu0 0.0
        %331 = vmatmul.mubr.f32.gmra.mrb[0].mxu0 %v200
        %v332 = vpop.f32.mrb[0].mxu0
        %v333 = vadd.f32 0.0, %v332
        %v334 = vpop.f32.mrb[0].mxu0
        %v335 = vadd.f32 0.0, %v334
        %336 = vmatprep.mubr.f32.mxu0 0.0
        %337 = vmatmul.mubr.f32.gmra.mrb[0].mxu0 %v203
        %v338 = vpop.f32.mrb[0].mxu0
        %v339 = vadd.f32 0.0, %v338
        %v340 = vpop.f32.mrb[0].mxu0
        %v341 = vadd.f32 0.0, %v340
        %342 = vmatprep.mubr.f32.mxu0 0.0
        %343 = vmatmul.mubr.f32.gmra.mrb[0].mxu0 %v206
        %v344 = vpop.f32.mrb[0].mxu0
        %v345 = vadd.f32 0.0, %v344
        %v346 = vpop.f32.mrb[0].mxu0
        %v347 = vadd.f32 0.0, %v346
        %348 = vmatprep.mubr.f32.mxu0 0.0
        %349 = vmatmul.mubr.f32.gmra.mrb[0].mxu0 %v209
        %v350 = vpop.f32.mrb[0].mxu0
        %v351 = vadd.f32 0.0, %v350
        %v352 = vpop.f32.mrb[0].mxu0
        %v353 = vadd.f32 0.0, %v352
        %354 = vmatprep.mubr.f32.mxu0 0.0
        %355 = vmatmul.mubr.f32.gmra.mrb[0].mxu0 %v212
        %v356 = vpop.f32.mrb[0].mxu0
        %v357 = vadd.f32 0.0, %v356
        %v358 = vpop.f32.mrb[0].mxu0
        %v359 = vadd.f32 0.0, %v358
        %360 = vmatprep.mubr.f32.mxu0 0.0
        %361 = vmatmul.mubr.f32.gmra.mrb[0].mxu0 %v215
        %v362 = vpop.f32.mrb[0].mxu0
        %v363 = vadd.f32 0.0, %v362
        %v364 = vpop.f32.mrb[0].mxu0
        %v365 = vadd.f32 0.0, %v364
        %366 = vmatprep.mubr.f32.mxu0 0.0
        %367 = vmatmul.mubr.f32.gmra.mrb[0].mxu0 %v218
        %v368 = vpop.f32.mrb[0].mxu0
        %v369 = vadd.f32 0.0, %v368
        %v370 = vpop.f32.mrb[0].mxu0
        %v371 = vadd.f32 0.0, %v370
        %372 = vmatprep.mubr.f32.mxu0 0.0
        %373 = vmatmul.mubr.f32.gmra.mrb[0].mxu0 %v221
        %v374 = vpop.f32.mrb[0].mxu0
        %v375 = vadd.f32 0.0, %v374
        %v376 = vpop.f32.mrb[0].mxu0
        %v377 = vadd.f32 0.0, %v376
        %378 = vmatprep.mubr.f32.mxu0 0.0
        %379 = vmatmul.mubr.f32.gmra.mrb[0].mxu0 %v224
        %v380 = vpop.f32.mrb[0].mxu0
        %v381 = vadd.f32 0.0, %v380
        %v382 = vpop.f32.mrb[0].mxu0
        %v383 = vadd.f32 0.0, %v382
        %384 = vmatprep.mubr.f32.mxu0 0.0
        %385 = vmatmul.mubr.f32.gmra.mrb[0].mxu0 %v227
        %v386 = vpop.f32.mrb[0].mxu0
        %v387 = vadd.f32 0.0, %v386
        %v388 = vpop.f32.mrb[0].mxu0
        %v389 = vadd.f32 0.0, %v388
        %390 = vmatprep.mubr.f32.mxu0 0.0
        %391 = vmatmul.mubr.f32.gmra.mrb[0].mxu0 %v230
        %v392 = vpop.f32.mrb[0].mxu0
        %v393 = vadd.f32 0.0, %v392
        %v394 = vpop.f32.mrb[0].mxu0
        %v395 = vadd.f32 0.0, %v394
        %396 = vmatprep.mubr.f32.mxu0 0.0
        %397 = vmatmul.mubr.f32.gmra.mrb[0].mxu0 %v233
        %v398 = vpop.f32.mrb[0].mxu0
        %v399 = vadd.f32 0.0, %v398
        %v400 = vpop.f32.mrb[0].mxu0
        %v401 = vadd.f32 0.0, %v400
        %402 = vdwg.mxu0
        %v403 = vmul.f32 %v309, 0.5
        %v404 = vmul.f32 %v311, 0.5
        %v405 = vmul.f32 %v315, 0.5
        %v406 = vmul.f32 %v317, 0.5
        %v407 = vmul.f32 %v321, 0.5
        %v408 = vmul.f32 %v323, 0.5
        %v409 = vmul.f32 %v327, 0.5
        %v410 = vmul.f32 %v329, 0.5
        %v411 = vmul.f32 %v333, 0.5
        %v412 = vmul.f32 %v335, 0.5
        %v413 = vmul.f32 %v339, 0.5
        %v414 = vmul.f32 %v341, 0.5
        %v415 = vmul.f32 %v345, 0.5
        %v416 = vmul.f32 %v347, 0.5
        %v417 = vmul.f32 %v351, 0.5
        %v418 = vmul.f32 %v353, 0.5
        %v419 = vmul.f32 %v357, 0.5
        %v420 = vmul.f32 %v359, 0.5
        %v421 = vmul.f32 %v363, 0.5
        %v422 = vmul.f32 %v365, 0.5
        %v423 = vmul.f32 %v369, 0.5
        %v424 = vmul.f32 %v371, 0.5
        %v425 = vmul.f32 %v375, 0.5
        %v426 = vmul.f32 %v377, 0.5
        %v427 = vmul.f32 %v381, 0.5
        %v428 = vmul.f32 %v383, 0.5
        %v429 = vmul.f32 %v387, 0.5
        %v430 = vmul.f32 %v389, 0.5
        %v431 = vmul.f32 %v393, 0.5
        %v432 = vmul.f32 %v395, 0.5
        %v433 = vmul.f32 %v399, 0.5
        %v434 = vmul.f32 %v401, 0.5
        %v435 = vtanh.pop %v403
        %v436 = vtanh.pop %v404
        %v437 = vtanh.pop %v405
        %v438 = vtanh.pop %v406
        %v439 = vtanh.pop %v407
        %v440 = vtanh.pop %v408
        %v441 = vtanh.pop %v409
        %v442 = vtanh.pop %v410
        %v443 = vtanh.pop %v411
        %v444 = vtanh.pop %v412
        %v445 = vtanh.pop %v413
        %v446 = vtanh.pop %v414
        %v447 = vtanh.pop %v415
        %v448 = vtanh.pop %v416
        %v449 = vtanh.pop %v417
        %v450 = vtanh.pop %v418
        %v451 = vtanh.pop %v419
        %v452 = vtanh.pop %v420
        %v453 = vtanh.pop %v421
        %v454 = vtanh.pop %v422
        %v455 = vtanh.pop %v423
        %v456 = vtanh.pop %v424
        %v457 = vtanh.pop %v425
        %v458 = vtanh.pop %v426
        %v459 = vtanh.pop %v427
        %v460 = vtanh.pop %v428
        %v461 = vtanh.pop %v429
        %v462 = vtanh.pop %v430
        %v463 = vtanh.pop %v431
        %v464 = vtanh.pop %v432
        %v465 = vtanh.pop %v433
        %v466 = vtanh.pop %v434
        %v467 = vmul.f32 %v435, 0.5
        %v468 = vmul.f32 %v436, 0.5
        %v469 = vmul.f32 %v437, 0.5
        %v470 = vmul.f32 %v438, 0.5
        %v471 = vmul.f32 %v439, 0.5
        %v472 = vmul.f32 %v440, 0.5
        %v473 = vmul.f32 %v441, 0.5
        %v474 = vmul.f32 %v442, 0.5
        %v475 = vmul.f32 %v443, 0.5
        %v476 = vmul.f32 %v444, 0.5
        %v477 = vmul.f32 %v445, 0.5
        %v478 = vmul.f32 %v446, 0.5
        %v479 = vmul.f32 %v447, 0.5
        %v480 = vmul.f32 %v448, 0.5
        %v481 = vmul.f32 %v449, 0.5
        %v482 = vmul.f32 %v450, 0.5
        %v483 = vmul.f32 %v451, 0.5
        %v484 = vmul.f32 %v452, 0.5
        %v485 = vmul.f32 %v453, 0.5
        %v486 = vmul.f32 %v454, 0.5
        %v487 = vmul.f32 %v455, 0.5
        %v488 = vmul.f32 %v456, 0.5
        %v489 = vmul.f32 %v457, 0.5
        %v490 = vmul.f32 %v458, 0.5
        %v491 = vmul.f32 %v459, 0.5
        %v492 = vmul.f32 %v460, 0.5
        %v493 = vmul.f32 %v461, 0.5
        %v494 = vmul.f32 %v462, 0.5
        %v495 = vmul.f32 %v463, 0.5
        %v496 = vmul.f32 %v464, 0.5
        %v497 = vmul.f32 %v465, 0.5
        %v498 = vmul.f32 %v466, 0.5
        %v499 = vadd.f32 %v467, 0.5
        %v500 = vadd.f32 %v468, 0.5
        %v501 = vadd.f32 %v469, 0.5
        %v502 = vadd.f32 %v470, 0.5
        %v503 = vadd.f32 %v471, 0.5
        %v504 = vadd.f32 %v472, 0.5
        %v505 = vadd.f32 %v473, 0.5
        %v506 = vadd.f32 %v474, 0.5
        %v507 = vadd.f32 %v475, 0.5
        %v508 = vadd.f32 %v476, 0.5
        %v509 = vadd.f32 %v477, 0.5
        %v510 = vadd.f32 %v478, 0.5
        %v511 = vadd.f32 %v479, 0.5
        %v512 = vadd.f32 %v480, 0.5
        %v513 = vadd.f32 %v481, 0.5
        %v514 = vadd.f32 %v482, 0.5
        %v515 = vadd.f32 %v483, 0.5
        %v516 = vadd.f32 %v484, 0.5
        %v517 = vadd.f32 %v485, 0.5
        %v518 = vadd.f32 %v486, 0.5
        %v519 = vadd.f32 %v487, 0.5
        %v520 = vadd.f32 %v488, 0.5
        %v521 = vadd.f32 %v489, 0.5
        %v522 = vadd.f32 %v490, 0.5
        %v523 = vadd.f32 %v491, 0.5
        %v524 = vadd.f32 %v492, 0.5
        %v525 = vadd.f32 %v493, 0.5
        %v526 = vadd.f32 %v494, 0.5
        %v527 = vadd.f32 %v495, 0.5
        %v528 = vadd.f32 %v496, 0.5
        %v529 = vadd.f32 %v497, 0.5
        %v530 = vadd.f32 %v498, 0.5
        %531 = vst [vmem:[%s163] sm:$0xff] %v499
        %532 = vst [vmem:[%s163 + $0x8] sm:$0xff] %v500
        %533 = vst [vmem:[%s163 + $0x10] sm:$0xff] %v501
        %534 = vst [vmem:[%s163 + $0x18] sm:$0xff] %v502
        %535 = vst [vmem:[%s163 + $0x20] sm:$0xff] %v503
        %536 = vst [vmem:[%s163 + $0x28] sm:$0xff] %v504
        %537 = vst [vmem:[%s163 + $0x30] sm:$0xff] %v505
        %538 = vst [vmem:[%s163 + $0x38] sm:$0xff] %v506
        %539 = vst [vmem:[%s163 + $0x40] sm:$0xff] %v507
        %540 = vst [vmem:[%s163 + $0x48] sm:$0xff] %v508
        %541 = vst [vmem:[%s163 + $0x50] sm:$0xff] %v509
        %542 = vst [vmem:[%s163 + $0x58] sm:$0xff] %v510
        %543 = vst [vmem:[%s163 + $0x60] sm:$0xff] %v511
        %544 = vst [vmem:[%s163 + $0x68] sm:$0xff] %v512
        %545 = vst [vmem:[%s163 + $0x70] sm:$0xff] %v513
        %546 = vst [vmem:[%s163 + $0x78] sm:$0xff] %v514
        %547 = vst [vmem:[%s163 + $0x80] sm:$0xff] %v515
        %548 = vst [vmem:[%s163 + $0x88] sm:$0xff] %v516
        %549 = vst [vmem:[%s163 + $0x90] sm:$0xff] %v517
        %550 = vst [vmem:[%s163 + $0x98] sm:$0xff] %v518
        %551 = vst [vmem:[%s163 + $0xa0] sm:$0xff] %v519
        %552 = vst [vmem:[%s163 + $0xa8] sm:$0xff] %v520
        %553 = vst [vmem:[%s163 + $0xb0] sm:$0xff] %v521
        %554 = vst [vmem:[%s163 + $0xb8] sm:$0xff] %v522
        %555 = vst [vmem:[%s163 + $0xc0] sm:$0xff] %v523
        %556 = vst [vmem:[%s163 + $0xc8] sm:$0xff] %v524
        %557 = vst [vmem:[%s163 + $0xd0] sm:$0xff] %v525
        %558 = vst [vmem:[%s163 + $0xd8] sm:$0xff] %v526
        %559 = vst [vmem:[%s163 + $0xe0] sm:$0xff] %v527
        %560 = vst [vmem:[%s163 + $0xe8] sm:$0xff] %v528
        %561 = vst [vmem:[%s163 + $0xf0] sm:$0xff] %v529
        %562 = vst [vmem:[%s163 + $0xf8] sm:$0xff] %v530
        %s563 = sand.u32 %s68, 1
        %s564 = sand.u32 %s68, 1
        %s565 = smul.addr %s564, 256
        %s566 = scalar_lea.vmem [#allocation3], %s565
        // Predicated region
        $region52: #{conv_transpose2d_sigmoid.1} parent=46 // pred_check
          %p567 = pneg %p78
        $region53: #{conv_transpose2d_sigmoid.1} parent=46 // pred_check_branch
          %569 = sbr.rel (%p567) target = $region55
        $region54: #{conv_transpose2d_sigmoid.1} parent=46 // pred_region
          %s570 = smul.u32 2, %s13
          %s571 = smul.addr %s570, 8
          %s572 = scalar_lea.vmem %s2, %s571
          // Predicated region
          $region56: #{conv_transpose2d_sigmoid.1} parent=54 // pred_check
            _
          $region57: #{conv_transpose2d_sigmoid.1} parent=54 // pred_check_branch
            %574 = sbr.rel (0) target = $region59
          $region58: #{conv_transpose2d_sigmoid.1} parent=54 // pred_region
            // Predicated region
            $region60: #{conv_transpose2d_sigmoid.1} parent=58 // pred_check
              _
            $region61: #{conv_transpose2d_sigmoid.1} parent=58 // pred_check_branch
              %576 = sbr.rel (0) target = $region63
            $region62: #{conv_transpose2d_sigmoid.1} parent=58 // pred_region
              loop: start=0, step=1, limit=1
              $region64: #{conv_transpose2d_sigmoid.1} parent=62 // loop_pre_header
                _
              $region65: #{conv_transpose2d_sigmoid.1} parent=62 // loop_header
                %s578 = sphi 0, %s582
                %p579 = scmp.ge.s32.totalorder %s578, 1
                %s583 = sphi %s566, %s566
                %s584 = sphi %s572, %s572
              $region66: #{conv_transpose2d_sigmoid.1} parent=62 // loop_header_branch
                %581 = sbr.rel (%p579) target = $region70
              $region67: #{conv_transpose2d_sigmoid.1} parent=62 // loop_body
                %v585 = vld [vmem:[%s583] sm:$0xff]
                %586 = vst [vmem:[%s584] sm:$0xff] %v585
                %v587 = vld [vmem:[%s583 + $0x8] sm:$0xff]
                %588 = vst [vmem:[%s584 + $0x8] sm:$0xff] %v587
                %v589 = vld [vmem:[%s583 + $0x10] sm:$0xff]
                %590 = vst [vmem:[%s584 + $0x20] sm:$0xff] %v589
                %v591 = vld [vmem:[%s583 + $0x18] sm:$0xff]
                %592 = vst [vmem:[%s584 + $0x28] sm:$0xff] %v591
                %v593 = vld [vmem:[%s583 + $0x20] sm:$0xff]
                %594 = vst [vmem:[%s584 + $0x40] sm:$0xff] %v593
                %v595 = vld [vmem:[%s583 + $0x28] sm:$0xff]
                %596 = vst [vmem:[%s584 + $0x48] sm:$0xff] %v595
                %v597 = vld [vmem:[%s583 + $0x30] sm:$0xff]
                %598 = vst [vmem:[%s584 + $0x60] sm:$0xff] %v597
                %v599 = vld [vmem:[%s583 + $0x38] sm:$0xff]
                %600 = vst [vmem:[%s584 + $0x68] sm:$0xff] %v599
                %v601 = vld [vmem:[%s583 + $0x40] sm:$0xff]
                %602 = vst [vmem:[%s584 + $0x80] sm:$0xff] %v601
                %v603 = vld [vmem:[%s583 + $0x48] sm:$0xff]
                %604 = vst [vmem:[%s584 + $0x88] sm:$0xff] %v603
                %v605 = vld [vmem:[%s583 + $0x50] sm:$0xff]
                %606 = vst [vmem:[%s584 + $0xa0] sm:$0xff] %v605
                %v607 = vld [vmem:[%s583 + $0x58] sm:$0xff]
                %608 = vst [vmem:[%s584 + $0xa8] sm:$0xff] %v607
                %v609 = vld [vmem:[%s583 + $0x60] sm:$0xff]
                %610 = vst [vmem:[%s584 + $0xc0] sm:$0xff] %v609
                %v611 = vld [vmem:[%s583 + $0x68] sm:$0xff]
                %612 = vst [vmem:[%s584 + $0xc8] sm:$0xff] %v611
                %v613 = vld [vmem:[%s583 + $0x70] sm:$0xff]
                %614 = vst [vmem:[%s584 + $0xe0] sm:$0xff] %v613
                %v615 = vld [vmem:[%s583 + $0x78] sm:$0xff]
                %616 = vst [vmem:[%s584 + $0xe8] sm:$0xff] %v615
                %v617 = vld [vmem:[%s583 + $0x80] sm:$0xff]
                %618 = vst [vmem:[%s584 + $0x100] sm:$0xff] %v617
                %v619 = vld [vmem:[%s583 + $0x88] sm:$0xff]
                %620 = vst [vmem:[%s584 + $0x108] sm:$0xff] %v619
                %v621 = vld [vmem:[%s583 + $0x90] sm:$0xff]
                %622 = vst [vmem:[%s584 + $0x120] sm:$0xff] %v621
                %v623 = vld [vmem:[%s583 + $0x98] sm:$0xff]
                %624 = vst [vmem:[%s584 + $0x128] sm:$0xff] %v623
                %v625 = vld [vmem:[%s583 + $0xa0] sm:$0xff]
                %626 = vst [vmem:[%s584 + $0x140] sm:$0xff] %v625
                %v627 = vld [vmem:[%s583 + $0xa8] sm:$0xff]
                %628 = vst [vmem:[%s584 + $0x148] sm:$0xff] %v627
                %v629 = vld [vmem:[%s583 + $0xb0] sm:$0xff]
                %630 = vst [vmem:[%s584 + $0x160] sm:$0xff] %v629
                %v631 = vld [vmem:[%s583 + $0xb8] sm:$0xff]
                %632 = vst [vmem:[%s584 + $0x168] sm:$0xff] %v631
                %v633 = vld [vmem:[%s583 + $0xc0] sm:$0xff]
                %634 = vst [vmem:[%s584 + $0x180] sm:$0xff] %v633
                %v635 = vld [vmem:[%s583 + $0xc8] sm:$0xff]
                %636 = vst [vmem:[%s584 + $0x188] sm:$0xff] %v635
                %v637 = vld [vmem:[%s583 + $0xd0] sm:$0xff]
                %638 = vst [vmem:[%s584 + $0x1a0] sm:$0xff] %v637
                %v639 = vld [vmem:[%s583 + $0xd8] sm:$0xff]
                %640 = vst [vmem:[%s584 + $0x1a8] sm:$0xff] %v639
                %v641 = vld [vmem:[%s583 + $0xe0] sm:$0xff]
                %642 = vst [vmem:[%s584 + $0x1c0] sm:$0xff] %v641
                %v643 = vld [vmem:[%s583 + $0xe8] sm:$0xff]
                %644 = vst [vmem:[%s584 + $0x1c8] sm:$0xff] %v643
                %v645 = vld [vmem:[%s583 + $0xf0] sm:$0xff]
                %646 = vst [vmem:[%s584 + $0x1e0] sm:$0xff] %v645
                %v647 = vld [vmem:[%s583 + $0xf8] sm:$0xff]
                %648 = vst [vmem:[%s584 + $0x1e8] sm:$0xff] %v647
              $region68: #{conv_transpose2d_sigmoid.1} parent=62 // loop_footer
                %s582 = sadd.s32 1, %s578
              $region69: #{conv_transpose2d_sigmoid.1} parent=62 // loop_footer_branch
                %577 = sbr.rel target = $region65
              $region70: #{conv_transpose2d_sigmoid.1} parent=62 // loop_exit
                _
            $region63: #{conv_transpose2d_sigmoid.1} parent=58 // pred_fallthru
              _
            // Predicated region
            $region71: #{conv_transpose2d_sigmoid.1} parent=58 // pred_check
              _
            $region72: #{conv_transpose2d_sigmoid.1} parent=58 // pred_check_branch
              %650 = sbr.rel target = $region74
            $region73: #{conv_transpose2d_sigmoid.1} parent=58 // pred_region
              _
            $region74: #{conv_transpose2d_sigmoid.1} parent=58 // pred_fallthru
              _
          $region59: #{conv_transpose2d_sigmoid.1} parent=54 // pred_fallthru
            _
          %651 = vnop
        $region55: #{conv_transpose2d_sigmoid.1} parent=46 // pred_fallthru
          _
      $region47: #{conv_transpose2d_sigmoid.1} parent=5 // pred_fallthru
        _
      %p652 = scmp.le.s32.totalorder 2, %s8
      // Predicated region
      $region75: #{conv_transpose2d_sigmoid.1} parent=5 // pred_check
        %p653 = pneg %p652
      $region76: #{conv_transpose2d_sigmoid.1} parent=5 // pred_check_branch
        %655 = sbr.rel (%p653) target = $region78
      $region77: #{conv_transpose2d_sigmoid.1} parent=5 // pred_region
        %s656 = ssub.s32 %s8, 2
        // Predicated region
        $region79: #{conv_transpose2d_sigmoid.1} parent=77 // pred_check
          %p657 = pneg %p84
        $region80: #{conv_transpose2d_sigmoid.1} parent=77 // pred_check_branch
          %659 = sbr.rel (%p657) target = $region82
        $region81: #{conv_transpose2d_sigmoid.1} parent=77 // pred_region
          %s660 = sand.u32 %s69, 1
          %s661 = sand.u32 %s69, 1
          %s662 = smul.addr %s661, 256
          %s663 = scalar_lea.vmem [#allocation3], %s662
        $region82: #{conv_transpose2d_sigmoid.1} parent=77 // pred_fallthru
          _
      $region78: #{conv_transpose2d_sigmoid.1} parent=5 // pred_fallthru
        _
    $region6: #{conv_transpose2d_sigmoid.1} parent=1 // loop_footer
      %s12 = sadd.s32 1, %s8
    $region7: #{conv_transpose2d_sigmoid.1} parent=1 // loop_footer_branch
      %7 = sbr.rel target = $region3
    $region8: #{conv_transpose2d_sigmoid.1} parent=1 // loop_exit
      _

</llo_original>
